<compile_context>
chip_gen: v7x
topology: tpu7x:2x2x1
jax: 0.10.0
libtpu: 0.0.40
codegen_flags: <defaults>
</compile_context>

<pallas_src>
import functools

import jax
import jax.numpy as jnp
from jax.experimental import pallas as pl
from jax.experimental.pallas import tpu as pltpu


def _round_up(x, m):
    return ((x + m - 1) // m) * m


def _block_diag(w, p):
    """[in, out] -> [p*in, p*out] block-diagonal replication (setup-time only)."""
    if p == 1:
        return w
    i, o = w.shape
    eye = jnp.eye(p, dtype=w.dtype)
    return jnp.einsum("pq,io->piqo", eye, w).reshape(p * i, p * o)


def _alpha_kernel(x_ref, w1_ref, b1_ref, wh_ref, bh_ref, mask_ref, out_ref):
    x = x_ref[...]

    # h = leaky_relu(x @ W1 + b1, 0.2)  ->  single VPU max (slope < 1).
    pre = jnp.dot(x, w1_ref[...], preferred_element_type=jnp.float32) + b1_ref[...]
    h = jnp.maximum(pre, 0.2 * pre)

    # Fused heads: z = h @ [Wmu | Wsig] + [bmu | bsig]  (block-diagonal when packed).
    z = jnp.dot(h.astype(wh_ref.dtype), wh_ref[...],
                preferred_element_type=jnp.float32) + bh_ref[...]

    # Numerically stable softplus on the whole slab (EUP slot is otherwise idle),
    # then lane-select: mu lanes keep z, sigma lanes take softplus(z).
    sp = jnp.maximum(z, 0.0) + jnp.log1p(jnp.exp(-jnp.abs(z)))
    out_ref[...] = jnp.where(mask_ref[...] != 0.0, z, sp).astype(out_ref.dtype)


def alpha_forward(x, w1, b1, wmu, bmu, wsig, bsig, *,
                  block_b=8192, compute_dtype=None, out_dtype=jnp.float32):
    """x: [B, in_dim]; weights pre-transposed as [in, out]; biases [1, out].

    Returns (mu, sigma), each [B, y_dim].
    """
    B, in_dim = x.shape
    hid = w1.shape[1]
    y_dim = wmu.shape[1]
    if compute_dtype is None:
        compute_dtype = x.dtype

    # ---- parameter prep (tiny; hoist to setup or rely on jit for repeated calls) ----
    # Fuse the two heads along the output (lane) axis: one matmul of width 2*y_dim.
    w_heads = jnp.concatenate([wmu, wsig], axis=1)          # [hid, 2*y_dim]
    b_heads = jnp.concatenate([bmu, bsig], axis=1)          # [1,  2*y_dim]

    # Lane-dense packing: put p batch rows side-by-side on the 128-lane axis.
    if in_dim < 128 and 128 % in_dim == 0 and B % (128 // in_dim) == 0:
        p = 128 // in_dim
    else:
        p = 1        # plain-layout fallback (no extra pad/copy passes)

    w1_k = _block_diag(w1, p).astype(compute_dtype)          # [p*in,  p*hid]
    wh_k = _block_diag(w_heads, p).astype(compute_dtype)     # [p*hid, p*2*y]
    b1_k = jnp.tile(b1, (1, p)).astype(jnp.float32)          # [1, p*hid]
    bh_k = jnp.tile(b_heads, (1, p)).astype(jnp.float32)     # [1, p*2*y]
    mu_mask = jnp.tile(
        jnp.concatenate([jnp.ones((1, y_dim), jnp.float32),
                         jnp.zeros((1, y_dim), jnp.float32)], axis=1), (1, p))

    in_w, hid_w, out_w = p * in_dim, p * hid, p * 2 * y_dim
    rows = B // p
    x_k = x.reshape(rows, in_w).astype(compute_dtype)        # row-major: free

    # ---- batch tiling ----
    # Big tiles amortize the per-grid-step overhead (HBM-bound kernel), but keep
    # each f32 intermediate slab <= ~4 MiB so double-buffered x/out + intermediates
    # + resident weights fit comfortably in scoped VMEM on all generations.
    vmem_rows = max(8, ((4 * 1024 * 1024) // (max(in_w, hid_w, out_w) * 4)) // 8 * 8)
    block_rows = max(8, min(block_b // p, vmem_rows))
    if rows <= 256:
        tr = rows                                             # one small full-extent tile
    else:
        # >=2 grid steps so both v7x TensorCores get work on the "parallel" batch axis.
        tr = min(block_rows, _round_up(pl.cdiv(rows, 2), 8))
    grid = (pl.cdiv(rows, tr),)
    # Ragged last tile: Pallas pads out-of-bounds reads and drops out-of-bounds
    # writes, so no wrapper jnp.pad(x) and no out[:B] slice (no extra HBM passes).

    out = pl.pallas_call(
        _alpha_kernel,
        out_shape=jax.ShapeDtypeStruct((rows, out_w), out_dtype),
        grid=grid,
        in_specs=[
            pl.BlockSpec((tr, in_w), lambda i: (i, 0)),       # x: tiled over batch
            pl.BlockSpec((in_w, hid_w), lambda i: (0, 0)),    # W1 (block-diag): resident
            pl.BlockSpec((1, hid_w), lambda i: (0, 0)),       # b1: resident
            pl.BlockSpec((hid_w, out_w), lambda i: (0, 0)),   # fused head W: resident
            pl.BlockSpec((1, out_w), lambda i: (0, 0)),       # fused head b: resident
            pl.BlockSpec((1, out_w), lambda i: (0, 0)),       # mu-lane mask: resident
        ],
        out_specs=pl.BlockSpec((tr, out_w), lambda i: (i, 0)),
        compiler_params=pltpu.CompilerParams(
            dimension_semantics=("parallel",),
            vmem_limit_bytes=32 * 1024 * 1024,
        ),
    )(x_k, w1_k, b1_k, wh_k, bh_k, mu_mask)

    out = out.reshape(B, 2 * y_dim)                           # free (row-major)
    return out[:, :y_dim], out[:, y_dim:]


def _init_linear(key, in_dim, out_dim):
    # PyTorch nn.Linear default init: U(-1/sqrt(in), 1/sqrt(in)) for W and b.
    kw, kb = jax.random.split(key)
    bound = 1.0 / jnp.sqrt(jnp.float32(in_dim))
    w = jax.random.uniform(kw, (in_dim, out_dim), jnp.float32, -bound, bound)  # [in,out]
    b = jax.random.uniform(kb, (1, out_dim), jnp.float32, -bound, bound)
    return w, b


def _reference(x, w1, b1, wmu, bmu, wsig, bsig):
    pre = x @ w1 + b1
    h = jnp.where(pre >= 0, pre, 0.2 * pre)
    mu = h @ wmu + bmu
    z = h @ wsig + bsig
    sigma = jnp.maximum(z, 0.0) + jnp.log1p(jnp.exp(-jnp.abs(z)))
    return mu, sigma


if __name__ == "__main__":
    input_dim = 32
    output_dim = 32
    y_dim = 16

    key = jax.random.PRNGKey(0)
    kx, k1, k2, k3, kx2, kx3 = jax.random.split(key, 6)

    w1, b1 = _init_linear(k1, input_dim, output_dim)
    wmu, bmu = _init_linear(k2, output_dim, y_dim)
    wsig, bsig = _init_linear(k3, output_dim, y_dim)

    fwd = jax.jit(alpha_forward)
    fwd_bf16 = jax.jit(functools.partial(alpha_forward, compute_dtype=jnp.bfloat16))

    def check(x, atol, f=fwd):
        mu, sigma = f(x, w1, b1, wmu, bmu, wsig, bsig)
        jax.block_until_ready((mu, sigma))
        mu_r, sigma_r = _reference(x, w1, b1, wmu, bmu, wsig, bsig)
        assert mu.shape == (x.shape[0], y_dim) and sigma.shape == (x.shape[0], y_dim)
        assert jnp.allclose(mu, mu_r, atol=atol), "mu mismatch"
        assert jnp.allclose(sigma, sigma_r, atol=atol), "sigma mismatch"
        assert jnp.all(sigma >= 0.0), "softplus must be non-negative"

    # Small batch: packed (4 rows per 128-lane row), single full-extent tile.
    x_small = jax.random.normal(kx, (8, input_dim), jnp.float32)
    check(x_small, 2e-5)

    # Larger batch: packed path, two grid steps with a ragged last tile (no pad/slice).
    x_big = jax.random.normal(kx2, (1040, input_dim), jnp.float32)
    check(x_big, 2e-5)

    # Batch not divisible by the pack factor: unpacked fallback path, ragged tile.
    x_odd = jax.random.normal(kx3, (1037, input_dim), jnp.float32)
    check(x_odd, 2e-5)

    # bf16 inputs/weights (halves HBM read traffic); accumulation / elementwise in f32.
    check(x_big, 1e-1, f=fwd_bf16)

    print("KERNEL_OK")
</pallas_src>

<mosaic_0001>
module attributes {stable_mosaic.version = 11 : i64} {
  func.func @_alpha_kernel(%arg0: i32, %arg1: memref<2x128xf32, #tpu.memory_space<vmem>>, %arg2: memref<128x128xf32, #tpu.memory_space<vmem>>, %arg3: memref<1x128xf32, #tpu.memory_space<vmem>>, %arg4: memref<128x128xf32, #tpu.memory_space<vmem>>, %arg5: memref<1x128xf32, #tpu.memory_space<vmem>>, %arg6: memref<1x128xf32, #tpu.memory_space<vmem>>, %arg7: memref<2x128xf32, #tpu.memory_space<vmem>>) attributes {dimension_semantics = [#tpu.dimension_semantics<parallel>], iteration_bounds = array<i64: 1>, scalar_prefetch = 0 : i64, scratch_operands = 0 : i64, tpu.core_type = #tpu.core_type<tc>, window_params = [{transform_indices = @transform_0, window_bounds = array<i64: 2, 128>}, {pipeline_mode = #tpu.pipeline_mode<synchronous>, transform_indices = @transform_1, window_bounds = array<i64: 128, 128>}, {pipeline_mode = #tpu.pipeline_mode<synchronous>, transform_indices = @transform_2, window_bounds = array<i64: 1, 128>}, {pipeline_mode = #tpu.pipeline_mode<synchronous>, transform_indices = @transform_3, window_bounds = array<i64: 128, 128>}, {pipeline_mode = #tpu.pipeline_mode<synchronous>, transform_indices = @transform_4, window_bounds = array<i64: 1, 128>}, {pipeline_mode = #tpu.pipeline_mode<synchronous>, transform_indices = @transform_5, window_bounds = array<i64: 1, 128>}, {transform_indices = @transform_6, window_bounds = array<i64: 2, 128>}]} {
    %c0 = arith.constant 0 : index
    %c0_0 = arith.constant 0 : index
    %0 = vector.load %arg1[%c0, %c0_0] : memref<2x128xf32, #tpu.memory_space<vmem>>, vector<2x128xf32>
    %c0_1 = arith.constant 0 : index
    %c0_2 = arith.constant 0 : index
    %1 = vector.load %arg2[%c0_1, %c0_2] : memref<128x128xf32, #tpu.memory_space<vmem>>, vector<128x128xf32>
    %cst = arith.constant dense<0.000000e+00> : vector<2x128xf32>
    %2 = tpu.matmul %0, %1, %cst {dimension_numbers = #tpu.dot_dimension_numbers<[1], [0], [0], [1], [0, 0, 1, 1], [], []>} : vector<2x128xf32>, vector<128x128xf32>, vector<2x128xf32> -> vector<2x128xf32>
    %c0_3 = arith.constant 0 : index
    %c0_4 = arith.constant 0 : index
    %3 = vector.load %arg3[%c0_3, %c0_4] : memref<1x128xf32, #tpu.memory_space<vmem>>, vector<1x128xf32>
    %4 = vector.broadcast %3 : vector<1x128xf32> to vector<2x128xf32>
    %5 = arith.addf %2, %4 : vector<2x128xf32>
    %cst_5 = arith.constant 2.000000e-01 : f32
    %6 = vector.broadcast %cst_5 : f32 to vector<2x128xf32>
    %7 = arith.mulf %6, %5 : vector<2x128xf32>
    %8 = arith.maximumf %5, %7 : vector<2x128xf32>
    %c0_6 = arith.constant 0 : index
    %c0_7 = arith.constant 0 : index
    %9 = vector.load %arg4[%c0_6, %c0_7] : memref<128x128xf32, #tpu.memory_space<vmem>>, vector<128x128xf32>
    %cst_8 = arith.constant dense<0.000000e+00> : vector<2x128xf32>
    %10 = tpu.matmul %8, %9, %cst_8 {dimension_numbers = #tpu.dot_dimension_numbers<[1], [0], [0], [1], [0, 0, 1, 1], [], []>} : vector<2x128xf32>, vector<128x128xf32>, vector<2x128xf32> -> vector<2x128xf32>
    %c0_9 = arith.constant 0 : index
    %c0_10 = arith.constant 0 : index
    %11 = vector.load %arg5[%c0_9, %c0_10] : memref<1x128xf32, #tpu.memory_space<vmem>>, vector<1x128xf32>
    %12 = vector.broadcast %11 : vector<1x128xf32> to vector<2x128xf32>
    %13 = arith.addf %10, %12 : vector<2x128xf32>
    %cst_11 = arith.constant 0.000000e+00 : f32
    %14 = vector.broadcast %cst_11 : f32 to vector<2x128xf32>
    %15 = arith.maximumf %13, %14 : vector<2x128xf32>
    %16 = math.absf %13 : vector<2x128xf32>
    %cst_12 = arith.constant 0.000000e+00 : f32
    %17 = vector.broadcast %cst_12 : f32 to vector<2x128xf32>
    %18 = arith.subf %17, %16 : vector<2x128xf32>
    %19 = math.exp %18 : vector<2x128xf32>
    %20 = math.log1p %19 : vector<2x128xf32>
    %21 = arith.addf %15, %20 : vector<2x128xf32>
    %c0_13 = arith.constant 0 : index
    %c0_14 = arith.constant 0 : index
    %22 = vector.load %arg6[%c0_13, %c0_14] : memref<1x128xf32, #tpu.memory_space<vmem>>, vector<1x128xf32>
    %cst_15 = arith.constant 0.000000e+00 : f32
    %23 = vector.broadcast %cst_15 : f32 to vector<1x128xf32>
    %24 = arith.cmpf one, %22, %23 : vector<1x128xf32>
    %25 = vector.shape_cast %24 : vector<1x128xi1> to vector<1x128xi1>
    %26 = vector.broadcast %25 : vector<1x128xi1> to vector<2x128xi1>
    %27 = arith.select %26, %13, %21 : vector<2x128xi1>, vector<2x128xf32>
    %c0_16 = arith.constant 0 : index
    %c0_17 = arith.constant 0 : index
    %28 = vector.load %arg7[%c0_16, %c0_17] : memref<2x128xf32, #tpu.memory_space<vmem>>, vector<2x128xf32>
    tpu.vector_store %arg7[%c0_16, %c0_17], %27 {strides = array<i32>} : memref<2x128xf32, #tpu.memory_space<vmem>>, vector<2x128xf32>,
    return
  }
  func.func @transform_0(%arg0: i32) -> (i32, i32) {
    %c0_i32 = arith.constant 0 : i32
    %c0_i32_0 = arith.constant 0 : i32
    return %arg0, %c0_i32 : i32, i32
  }
  func.func @transform_1(%arg0: i32) -> (i32, i32) {
    %c0_i32 = arith.constant 0 : i32
    %c0_i32_0 = arith.constant 0 : i32
    %c0_i32_1 = arith.constant 0 : i32
    return %c0_i32, %c0_i32_0 : i32, i32
  }
  func.func @transform_2(%arg0: i32) -> (i32, i32) {
    %c0_i32 = arith.constant 0 : i32
    %c0_i32_0 = arith.constant 0 : i32
    %c0_i32_1 = arith.constant 0 : i32
    return %c0_i32, %c0_i32_0 : i32, i32
  }
  func.func @transform_3(%arg0: i32) -> (i32, i32) {
    %c0_i32 = arith.constant 0 : i32
    %c0_i32_0 = arith.constant 0 : i32
    %c0_i32_1 = arith.constant 0 : i32
    return %c0_i32, %c0_i32_0 : i32, i32
  }
  func.func @transform_4(%arg0: i32) -> (i32, i32) {
    %c0_i32 = arith.constant 0 : i32
    %c0_i32_0 = arith.constant 0 : i32
    %c0_i32_1 = arith.constant 0 : i32
    return %c0_i32, %c0_i32_0 : i32, i32
  }
  func.func @transform_5(%arg0: i32) -> (i32, i32) {
    %c0_i32 = arith.constant 0 : i32
    %c0_i32_0 = arith.constant 0 : i32
    %c0_i32_1 = arith.constant 0 : i32
    return %c0_i32, %c0_i32_0 : i32, i32
  }
  func.func @transform_6(%arg0: i32) -> (i32, i32) {
    %c0_i32 = arith.constant 0 : i32
    %c0_i32_0 = arith.constant 0 : i32
    return %arg0, %c0_i32 : i32, i32
  }
}

</mosaic_0001>

<llo_original>
// kernel: alpha_forward.1
$region0: #{alpha_forward.1}
  #allocation0 [shape = 'u32[]', space=smem, size = 0x4, offset = 0x4, fixed_abs, tag = 'smem constant byte address 0x4 - core index']
  #allocation1 [shape = 'u32[144,128]{1,0:T(1,128)}', space=vmem, size = 0x12000, scoped, tag = 'internal scratch']
  %s0 = inlined_call_operand.vmem [shape: f32[2,128], index: 0, kind: input, shape index: {}]
  %s1 = inlined_call_operand.vmem [shape: f32[128,128], index: 1, kind: input, shape index: {}]
  %s2 = inlined_call_operand.vmem [shape: f32[1,128], index: 2, kind: input, shape index: {}]
  %s3 = inlined_call_operand.vmem [shape: f32[128,128], index: 3, kind: input, shape index: {}]
  %s4 = inlined_call_operand.vmem [shape: f32[1,128], index: 4, kind: input, shape index: {}]
  %s5 = inlined_call_operand.vmem [shape: f32[1,128], index: 5, kind: input, shape index: {}]
  %s6 = inlined_call_operand.vmem [shape: f32[2,128], index: 6, kind: output, shape index: {}]
  %s7 = sld [smem:[#allocation0]]
  $region34: #{alpha_forward.1} parent=0
    _
  %s9 = ssub.s32 1, %s7
  %s10 = scalar_select 0, %s9, %s7
  // Predicated region
  $region2: #{alpha_forward.1} parent=0 // pred_check
    _
  $region3: #{alpha_forward.1} parent=0 // pred_check_branch
    %12 = sbr.rel (0) target = $region5
  $region4: #{alpha_forward.1} parent=0 // pred_region
    _
  $region5: #{alpha_forward.1} parent=0 // pred_fallthru
    _
  // Predicated region
  $region6: #{alpha_forward.1} parent=0 // pred_check
    _
  $region7: #{alpha_forward.1} parent=0 // pred_check_branch
    %14 = sbr.rel (0) target = $region9
  $region8: #{alpha_forward.1} parent=0 // pred_region
    _
  $region9: #{alpha_forward.1} parent=0 // pred_fallthru
    _
  // Predicated region
  $region10: #{alpha_forward.1} parent=0 // pred_check
    _
  $region11: #{alpha_forward.1} parent=0 // pred_check_branch
    %16 = sbr.rel (0) target = $region13
  $region12: #{alpha_forward.1} parent=0 // pred_region
    _
  $region13: #{alpha_forward.1} parent=0 // pred_fallthru
    _
  // Predicated region
  $region14: #{alpha_forward.1} parent=0 // pred_check
    _
  $region15: #{alpha_forward.1} parent=0 // pred_check_branch
    %18 = sbr.rel (0) target = $region17
  $region16: #{alpha_forward.1} parent=0 // pred_region
    _
  $region17: #{alpha_forward.1} parent=0 // pred_fallthru
    _
  // Predicated region
  $region18: #{alpha_forward.1} parent=0 // pred_check
    _
  $region19: #{alpha_forward.1} parent=0 // pred_check_branch
    %20 = sbr.rel (0) target = $region21
  $region20: #{alpha_forward.1} parent=0 // pred_region
    _
  $region21: #{alpha_forward.1} parent=0 // pred_fallthru
    _
  // Predicated region
  $region22: #{alpha_forward.1} parent=0 // pred_check
    _
  $region23: #{alpha_forward.1} parent=0 // pred_check_branch
    %22 = sbr.rel (0) target = $region25
  $region24: #{alpha_forward.1} parent=0 // pred_region
    _
  $region25: #{alpha_forward.1} parent=0 // pred_fallthru
    _
  %v23 = vld [vmem:[%s0] sm:$0x3]
  %v24 = vld [vmem:[%s1] sm:$0xff]
  %v25 = vld [vmem:[%s1 + $0x8] sm:$0xff]
  %v26 = vld [vmem:[%s1 + $0x10] sm:$0xff]
  %v27 = vld [vmem:[%s1 + $0x18] sm:$0xff]
  %v28 = vld [vmem:[%s1 + $0x20] sm:$0xff]
  %v29 = vld [vmem:[%s1 + $0x28] sm:$0xff]
  %v30 = vld [vmem:[%s1 + $0x30] sm:$0xff]
  %v31 = vld [vmem:[%s1 + $0x38] sm:$0xff]
  %v32 = vld [vmem:[%s1 + $0x40] sm:$0xff]
  %v33 = vld [vmem:[%s1 + $0x48] sm:$0xff]
  %v34 = vld [vmem:[%s1 + $0x50] sm:$0xff]
  %v35 = vld [vmem:[%s1 + $0x58] sm:$0xff]
  %v36 = vld [vmem:[%s1 + $0x60] sm:$0xff]
  %v37 = vld [vmem:[%s1 + $0x68] sm:$0xff]
  %v38 = vld [vmem:[%s1 + $0x70] sm:$0xff]
  %v39 = vld [vmem:[%s1 + $0x78] sm:$0xff]
  %v40 = vld [vmem:[%s2] sm:$0x1]
  %v42 = vlaneseq
  %v43 = vshrl.u32 %v42, 7
  %v44 = vsub.s32 0, %v43
  %v45 = vrot.slane %v40, %v44
  %47 = vmatprep.subr.mxu0 0.0
  %48 = vmatpush1.msra.mxu0 %v24
  %49 = vmatprep.subr.mxu0 0.0
  %50 = vmatpush1.msra.mxu0 %v25
  %51 = vmatprep.subr.mxu0 0.0
  %52 = vmatpush1.msra.mxu0 %v26
  %53 = vmatprep.subr.mxu0 0.0
  %54 = vmatpush1.msra.mxu0 %v27
  %55 = vmatprep.subr.mxu0 0.0
  %56 = vmatpush1.msra.mxu0 %v28
  %57 = vmatprep.subr.mxu0 0.0
  %58 = vmatpush1.msra.mxu0 %v29
  %59 = vmatprep.subr.mxu0 0.0
  %60 = vmatpush1.msra.mxu0 %v30
  %61 = vmatprep.subr.mxu0 0.0
  %62 = vmatpush1.msra.mxu0 %v31
  %63 = vmatprep.subr.mxu0 0.0
  %64 = vmatpush1.msra.mxu0 %v32
  %65 = vmatprep.subr.mxu0 0.0
  %66 = vmatpush1.msra.mxu0 %v33
  %67 = vmatprep.subr.mxu0 0.0
  %68 = vmatpush1.msra.mxu0 %v34
  %69 = vmatprep.subr.mxu0 0.0
  %70 = vmatpush1.msra.mxu0 %v35
  %71 = vmatprep.subr.mxu0 0.0
  %72 = vmatpush1.msra.mxu0 %v36
  %73 = vmatprep.subr.mxu0 0.0
  %74 = vmatpush1.msra.mxu0 %v37
  %75 = vmatprep.subr.mxu0 0.0
  %76 = vmatpush1.msra.mxu0 %v38
  %77 = vmatprep.subr.mxu0 0.0
  %78 = vmatpush1.msra.mxu0 %v39
  %79 = vmatprep.subr.mxu0 0.0
  %80 = vmatpush1.msra.mxu0 0.0
  %81 = vmatprep.subr.mxu0 0.0
  %82 = vmatpush1.msra.mxu0 0.0
  %83 = vmatprep.subr.mxu0 0.0
  %84 = vmatpush1.msra.mxu0 0.0
  %85 = vmatprep.subr.mxu0 0.0
  %86 = vmatpush1.msra.mxu0 0.0
  %87 = vmatprep.subr.mxu0 0.0
  %88 = vmatpush1.msra.mxu0 0.0
  %89 = vmatprep.subr.mxu0 0.0
  %90 = vmatpush1.msra.mxu0 0.0
  %91 = vmatprep.subr.mxu0 0.0
  %92 = vmatpush1.msra.mxu0 0.0
  %93 = vmatprep.subr.mxu0 0.0
  %94 = vmatpush1.msra.mxu0 0.0
  %95 = vmatprep.subr.mxu0 0.0
  %96 = vmatpush1.msra.mxu0 0.0
  %97 = vmatprep.subr.mxu0 0.0
  %98 = vmatpush1.msra.mxu0 0.0
  %99 = vmatprep.subr.mxu0 0.0
  %100 = vmatpush1.msra.mxu0 0.0
  %101 = vmatprep.subr.mxu0 0.0
  %102 = vmatpush1.msra.mxu0 0.0
  %103 = vmatprep.subr.mxu0 0.0
  %104 = vmatpush1.msra.mxu0 0.0
  %105 = vmatprep.subr.mxu0 0.0
  %106 = vmatpush1.msra.mxu0 0.0
  %107 = vmatprep.subr.mxu0 0.0
  %108 = vmatpush1.msra.mxu0 0.0
  %109 = vmatprep.subr.mxu0 0.0
  %110 = vmatpush1.msra.mxu0 0.0
  %111 = vmatprep.mubr.f32.mxu0 0.0
  %112 = vmatmul.mubr.f32.gmra.mrb[0].mxu0 %v23
  %v113 = vpop.f32.mrb[0].mxu0
  %v114 = vadd.f32 %v45, %v113
  %v115 = vpop.f32.mrb[0].mxu0
  %116 = vdwg.mxu0
  %v117 = vmul.f32 %v114, 0.2
  %v118 = vmax.f32 %v114, %v117
  %v119 = vld [vmem:[%s3] sm:$0xff]
  %v120 = vld [vmem:[%s3 + $0x8] sm:$0xff]
  %v121 = vld [vmem:[%s3 + $0x10] sm:$0xff]
  %v122 = vld [vmem:[%s3 + $0x18] sm:$0xff]
  %v123 = vld [vmem:[%s3 + $0x20] sm:$0xff]
  %v124 = vld [vmem:[%s3 + $0x28] sm:$0xff]
  %v125 = vld [vmem:[%s3 + $0x30] sm:$0xff]
  %v126 = vld [vmem:[%s3 + $0x38] sm:$0xff]
  %v127 = vld [vmem:[%s3 + $0x40] sm:$0xff]
  %v128 = vld [vmem:[%s3 + $0x48] sm:$0xff]
  %v129 = vld [vmem:[%s3 + $0x50] sm:$0xff]
  %v130 = vld [vmem:[%s3 + $0x58] sm:$0xff]
  %v131 = vld [vmem:[%s3 + $0x60] sm:$0xff]
  %v132 = vld [vmem:[%s3 + $0x68] sm:$0xff]
  %v133 = vld [vmem:[%s3 + $0x70] sm:$0xff]
  %v134 = vld [vmem:[%s3 + $0x78] sm:$0xff]
  %v135 = vld [vmem:[%s4] sm:$0x1]
  %v137 = vlaneseq
  %v138 = vshrl.u32 %v137, 7
  %v139 = vsub.s32 0, %v138
  %v140 = vrot.slane %v135, %v139
  %142 = vmatprep.subr.mxu0 0.0
  %143 = vmatpush1.msra.mxu0 %v119
  %144 = vmatprep.subr.mxu0 0.0
  %145 = vmatpush1.msra.mxu0 %v120
  %146 = vmatprep.subr.mxu0 0.0
  %147 = vmatpush1.msra.mxu0 %v121
  %148 = vmatprep.subr.mxu0 0.0
  %149 = vmatpush1.msra.mxu0 %v122
  %150 = vmatprep.subr.mxu0 0.0
  %151 = vmatpush1.msra.mxu0 %v123
  %152 = vmatprep.subr.mxu0 0.0
  %153 = vmatpush1.msra.mxu0 %v124
  %154 = vmatprep.subr.mxu0 0.0
  %155 = vmatpush1.msra.mxu0 %v125
  %156 = vmatprep.subr.mxu0 0.0
  %157 = vmatpush1.msra.mxu0 %v126
  %158 = vmatprep.subr.mxu0 0.0
  %159 = vmatpush1.msra.mxu0 %v127
  %160 = vmatprep.subr.mxu0 0.0
  %161 = vmatpush1.msra.mxu0 %v128
  %162 = vmatprep.subr.mxu0 0.0
  %163 = vmatpush1.msra.mxu0 %v129
  %164 = vmatprep.subr.mxu0 0.0
  %165 = vmatpush1.msra.mxu0 %v130
  %166 = vmatprep.subr.mxu0 0.0
  %167 = vmatpush1.msra.mxu0 %v131
  %168 = vmatprep.subr.mxu0 0.0
  %169 = vmatpush1.msra.mxu0 %v132
  %170 = vmatprep.subr.mxu0 0.0
  %171 = vmatpush1.msra.mxu0 %v133
  %172 = vmatprep.subr.mxu0 0.0
  %173 = vmatpush1.msra.mxu0 %v134
  %174 = vmatprep.subr.mxu0 0.0
  %175 = vmatpush1.msra.mxu0 0.0
  %176 = vmatprep.subr.mxu0 0.0
  %177 = vmatpush1.msra.mxu0 0.0
  %178 = vmatprep.subr.mxu0 0.0
  %179 = vmatpush1.msra.mxu0 0.0
  %180 = vmatprep.subr.mxu0 0.0
  %181 = vmatpush1.msra.mxu0 0.0
  %182 = vmatprep.subr.mxu0 0.0
  %183 = vmatpush1.msra.mxu0 0.0
  %184 = vmatprep.subr.mxu0 0.0
  %185 = vmatpush1.msra.mxu0 0.0
  %186 = vmatprep.subr.mxu0 0.0
  %187 = vmatpush1.msra.mxu0 0.0
  %188 = vmatprep.subr.mxu0 0.0
  %189 = vmatpush1.msra.mxu0 0.0
  %190 = vmatprep.subr.mxu0 0.0
  %191 = vmatpush1.msra.mxu0 0.0
  %192 = vmatprep.subr.mxu0 0.0
  %193 = vmatpush1.msra.mxu0 0.0
  %194 = vmatprep.subr.mxu0 0.0
  %195 = vmatpush1.msra.mxu0 0.0
  %196 = vmatprep.subr.mxu0 0.0
  %197 = vmatpush1.msra.mxu0 0.0
  %198 = vmatprep.subr.mxu0 0.0
  %199 = vmatpush1.msra.mxu0 0.0
  %200 = vmatprep.subr.mxu0 0.0
  %201 = vmatpush1.msra.mxu0 0.0
  %202 = vmatprep.subr.mxu0 0.0
  %203 = vmatpush1.msra.mxu0 0.0
  %204 = vmatprep.subr.mxu0 0.0
  %205 = vmatpush1.msra.mxu0 0.0
  %206 = vmatprep.mubr.f32.mxu0 0.0
  %207 = vmatmul.mubr.f32.gmra.mrb[0].mxu0 %v118
  %v208 = vpop.f32.mrb[0].mxu0
  %v209 = vadd.f32 %v140, %v208
  %v210 = vpop.f32.mrb[0].mxu0
  %211 = vdwg.mxu0
  %v212 = vmax.f32 %v209, 0.0
  %v213 = vand.u32 2147483647, %v209
  %v214 = vsub.f32 0.0, %v213
  %v215 = vmul.f32 %v214, 1.442695
  %v216 = vpow.pop %v215
  %v217 = vadd.f32 %v216, 1.0
  %v218 = vlog2.pop %v217
  %v219 = vmul.f32 %v218, 0.6931472
  %v220 = vmul.f32 -0.5, %v216
  %v221 = vadd.f32 %v220, 1.0
  %v222 = vmul.f32 %v221, %v216
  %v223 = vand.u32 2147483647, %v216
  %vm224 = vcmp.lt.f32.partialorder %v223, 0.0004427343
  %v225 = vsel %vm224, %v222, %v219
  %v226 = vadd.f32 %v212, %v225
  %v227 = vld [vmem:[%s5] sm:$0x1]
  %vm228 = vcmp.ne.f32.partialorder %v227, 0.0
  %v229 = vsel %vm228, 1, 0
  %v230 = vlaneseq
  %v231 = vshrl.u32 %v230, 7
  %v232 = vsub.s32 0, %v231
  %v233 = vrot.slane %v229, %v232
  %vm234 = vcmp.eq.s32.totalorder %v233, 1
  %v235 = vsel %vm234, %v209, %v226
  %236 = vst [vmem:[%s6] sm:$0x3] %v235
  // Predicated region
  $region26: #{alpha_forward.1} parent=0 // pred_check
    _
  $region27: #{alpha_forward.1} parent=0 // pred_check_branch
    %238 = sbr.rel (0) target = $region29
  $region28: #{alpha_forward.1} parent=0 // pred_region
    _
  $region29: #{alpha_forward.1} parent=0 // pred_fallthru
    _
  // Predicated region
  $region30: #{alpha_forward.1} parent=0 // pred_check
    _
  $region31: #{alpha_forward.1} parent=0 // pred_check_branch
    %240 = sbr.rel (0) target = $region33
  $region32: #{alpha_forward.1} parent=0 // pred_region
    _
  $region33: #{alpha_forward.1} parent=0 // pred_fallthru
    _

</llo_original>
